<compile_context>
chip_gen: v6e
topology: v6e:2x2x1
jax: 0.10.0
libtpu: 0.0.40
codegen_flags: <defaults>
</compile_context>

<pallas_src>
import functools

import jax
import jax.numpy as jnp
from jax.experimental import pallas as pl
from jax.experimental.pallas import tpu as pltpu


def _spatial_attn_kernel(x_ref, wcat_ref, bs_ref, vs_ref, o_ref):
    """One grid step: Bb batches.

    x_ref   : (Bb, N, F*T)  per-block activations (row-major over (f, t))
    wcat_ref: (F*T, 2*T)    [ W1e@W2 | W3e ]  (batch independent, resident)
    bs_ref  : (N, N)
    vs_ref  : (N, N)
    o_ref   : (Bb, N, N)    softmax(S, dim=1)
    """
    Bb, N, FT = x_ref.shape
    T = wcat_ref.shape[1] // 2

    # Merge (Bb, N) into the sublane axis -> dense 2-D matmul operand.
    # (leading-dim merge; minor dim untouched; N is a multiple of 8 -> no relayout)
    x2d = x_ref[...].reshape(Bb * N, FT)

    # Single fused x-side contraction: columns [0:T] = (x.W1).W2 , [T:2T] = W3.x
    xc = jnp.dot(x2d, wcat_ref[...], preferred_element_type=jnp.float32)  # (Bb*N, 2T)
    lhs = xc[:, :T].reshape(Bb, N, T)          # (Bb, N, T)
    rhs = xc[:, T:].reshape(Bb, N, T)          # (Bb, N, T)  == (W3.x) before transpose

    # product[b] = lhs[b] @ rhs[b]^T   (flash-attention 'bqd,bkd->bqk' pattern)
    product = jax.lax.dot_general(
        lhs, rhs,
        dimension_numbers=(((2,), (2,)), ((0,), (0,))),
        preferred_element_type=jnp.float32)    # (Bb, N, N)

    sig = jax.nn.sigmoid(product + bs_ref[...])        # bs broadcasts over batch

    # S[b] = Vs @ sig[b]  (batched 'bij,bjk->bik'; Vs broadcast over the block)
    vs_b = jnp.broadcast_to(vs_ref[...], (Bb, N, N))
    S = jax.lax.dot_general(
        vs_b, sig,
        dimension_numbers=(((2,), (1,)), ((0,), (0,))),
        preferred_element_type=jnp.float32)    # (Bb, N, N)

    # softmax over dim=1 of (B, N, N) == axis 1 of the per-block (Bb, N, N) tile
    m = jnp.max(S, axis=1, keepdims=True)
    e = jnp.exp(S - m)
    denom = jnp.sum(e, axis=1, keepdims=True)
    # approx reciprocal -> EUP slot; division stays off the VALU.
    o_ref[...] = (e * pl.reciprocal(denom, approx=True)).astype(o_ref.dtype)


@jax.jit
def spatial_attention(x, w1, w2, w3, bs, vs):
    """x: (B, N, F, T) float32. Returns (B, N, N) float32."""
    B, N, F, T = x.shape

    # ---- glue (batch independent, runs once under jit) -----------------------
    x2 = x.reshape(B, N, F * T)                                   # (B, N, F*T)
    # W12[f*T + t, t'] = W1[t] * W2[f, t']   == W1e @ W2   (precomputed fold)
    w12 = (w1[None, :, None] * w2[:, None, :]).reshape(F * T, T)
    # W3e[f*T + t, t'] = W3[f] * (t == t')
    eye_t = jnp.eye(T, dtype=x.dtype)
    w3e = (w3[:, None, None] * eye_t[None, :, :]).reshape(F * T, T)
    wcat = jnp.concatenate([w12, w3e], axis=1)                    # (F*T, 2*T)
    bs2 = bs.reshape(N, N)

    # ---- batch-block choice ---------------------------------------------------
    # Amortize per-step overhead (Bb up to 8 batches/step); when B is large enough,
    # keep >= 2 grid steps so v7x's two TensorCores both get work.
    # (Working set per step ~ Bb*(N*F*T + 2*N*N)*4 B, far under VMEM at these sizes;
    #  re-derive Bb / set vmem_limit_bytes for production N on v7x's 64 MiB VMEM.)
    if B <= 4:
        Bb = B
    else:
        Bb = min(8, -(-B // 2))
    nb = -(-B // Bb)              # number of grid steps
    Bp = nb * Bb
    if Bp != B:
        x2 = jnp.pad(x2, ((0, Bp - B), (0, 0), (0, 0)))

    out = pl.pallas_call(
        _spatial_attn_kernel,
        out_shape=jax.ShapeDtypeStruct((Bp, N, N), jnp.float32),
        grid_spec=pltpu.PrefetchScalarGridSpec(
            num_scalar_prefetch=0,
            grid=(nb,),
            in_specs=[
                pl.BlockSpec((Bb, N, F * T), lambda b: (b, 0, 0)),   # x (per-block)
                pl.BlockSpec((F * T, 2 * T), lambda b: (0, 0)),      # [W1e@W2 | W3e]
                pl.BlockSpec((N, N), lambda b: (0, 0)),              # bs
                pl.BlockSpec((N, N), lambda b: (0, 0)),              # Vs
            ],
            out_specs=pl.BlockSpec((Bb, N, N), lambda b: (b, 0, 0)),
        ),
        compiler_params=pltpu.CompilerParams(
            dimension_semantics=("parallel",)),
    )(x2, wcat, bs2, vs)
    return out[:B]


def spatial_attention_ref(x, w1, w2, w3, bs, vs):
    """Pure-JAX reference mirroring the PyTorch forward exactly."""
    lhs = jnp.einsum("bnft,t->bnf", x, w1)
    lhs = jnp.einsum("bnf,ft->bnt", lhs, w2)
    rhs = jnp.einsum("f,bnft->bnt", w3, x)          # (B, N, T)
    rhs = jnp.swapaxes(rhs, -1, -2)                 # (B, T, N)
    product = jnp.einsum("bnt,btm->bnm", lhs, rhs)  # (B, N, N)
    S = jnp.einsum("ij,bjk->bik", vs, jax.nn.sigmoid(product + bs))
    return jax.nn.softmax(S, axis=1)


if __name__ == "__main__":
    # Small shapes consistent with the module: batch=2, vertices N=16,
    # in_channels F=4, timesteps T=8.
    B, N, F, T = 2, 16, 4, 8

    key = jax.random.PRNGKey(0)
    kx, k1, k2, k3, kb, kv = jax.random.split(key, 6)

    x = jax.random.normal(kx, (B, N, F, T), dtype=jnp.float32)
    x_time_id = jnp.zeros((B, T, 2), dtype=jnp.float32)   # unused by forward
    y_time_id = jnp.zeros((B, T, 2), dtype=jnp.float32)   # unused by forward

    # Deterministic parameter init (module's __init__ only gives shapes).
    W1 = jax.random.normal(k1, (T,), dtype=jnp.float32) * 0.1
    W2 = jax.random.normal(k2, (F, T), dtype=jnp.float32) * 0.1
    W3 = jax.random.normal(k3, (F,), dtype=jnp.float32) * 0.1
    bs = jax.random.normal(kb, (1, N, N), dtype=jnp.float32) * 0.1
    Vs = jax.random.normal(kv, (N, N), dtype=jnp.float32) * 0.1

    out = spatial_attention(x, W1, W2, W3, bs, Vs)
    out = jax.block_until_ready(out)

    ref = spatial_attention_ref(x, W1, W2, W3, bs, Vs)
    assert out.shape == (B, N, N)
    # Tolerance accounts for the EUP approximate reciprocal in the softmax epilogue.
    assert jnp.allclose(out, ref, atol=1e-3, rtol=1e-3), "mismatch vs reference"

    print("KERNEL_OK")
</pallas_src>

<mosaic_0001>
module attributes {stable_mosaic.version = 11 : i64} {
  func.func @_spatial_attn_kernel(%arg0: i32, %arg1: memref<2x16x32xf32, #tpu.memory_space<vmem>>, %arg2: memref<32x16xf32, #tpu.memory_space<vmem>>, %arg3: memref<16x16xf32, #tpu.memory_space<vmem>>, %arg4: memref<16x16xf32, #tpu.memory_space<vmem>>, %arg5: memref<2x16x16xf32, #tpu.memory_space<vmem>>) attributes {dimension_semantics = [#tpu.dimension_semantics<parallel>], iteration_bounds = array<i64: 1>, scalar_prefetch = 0 : i64, scratch_operands = 0 : i64, tpu.core_type = #tpu.core_type<tc>, window_params = [{transform_indices = @transform_0, window_bounds = array<i64: 2, 16, 32>}, {pipeline_mode = #tpu.pipeline_mode<synchronous>, transform_indices = @transform_1, window_bounds = array<i64: 32, 16>}, {pipeline_mode = #tpu.pipeline_mode<synchronous>, transform_indices = @transform_2, window_bounds = array<i64: 16, 16>}, {pipeline_mode = #tpu.pipeline_mode<synchronous>, transform_indices = @transform_3, window_bounds = array<i64: 16, 16>}, {transform_indices = @transform_4, window_bounds = array<i64: 2, 16, 16>}]} {
    %c0 = arith.constant 0 : index
    %c0_0 = arith.constant 0 : index
    %c0_1 = arith.constant 0 : index
    %0 = vector.load %arg1[%c0, %c0_0, %c0_1] : memref<2x16x32xf32, #tpu.memory_space<vmem>>, vector<2x16x32xf32>
    %1 = vector.shape_cast %0 : vector<2x16x32xf32> to vector<32x32xf32>
    %c0_2 = arith.constant 0 : index
    %c0_3 = arith.constant 0 : index
    %2 = vector.load %arg2[%c0_2, %c0_3] : memref<32x16xf32, #tpu.memory_space<vmem>>, vector<32x16xf32>
    %cst = arith.constant dense<0.000000e+00> : vector<32x16xf32>
    %3 = tpu.matmul %1, %2, %cst {dimension_numbers = #tpu.dot_dimension_numbers<[1], [0], [0], [1], [0, 0, 1, 1], [], []>} : vector<32x32xf32>, vector<32x16xf32>, vector<32x16xf32> -> vector<32x16xf32>
    %4 = vector.extract_strided_slice %3 {offsets = [0, 0], sizes = [32, 8], strides = [1, 1]} : vector<32x16xf32> to vector<32x8xf32>
    %5 = vector.shape_cast %4 : vector<32x8xf32> to vector<2x16x8xf32>
    %6 = vector.extract_strided_slice %3 {offsets = [0, 8], sizes = [32, 8], strides = [1, 1]} : vector<32x16xf32> to vector<32x8xf32>
    %7 = vector.shape_cast %6 : vector<32x8xf32> to vector<2x16x8xf32>
    %cst_4 = arith.constant dense<0.000000e+00> : vector<2x16x16xf32>
    %8 = tpu.matmul %5, %7, %cst_4 {dimension_numbers = #tpu.dot_dimension_numbers<[2], [2], [1], [1], [0, 0, 0, 1, 1, 1], [0], [0]>} : vector<2x16x8xf32>, vector<2x16x8xf32>, vector<2x16x16xf32> -> vector<2x16x16xf32>
    %c0_5 = arith.constant 0 : index
    %c0_6 = arith.constant 0 : index
    %9 = vector.load %arg3[%c0_5, %c0_6] : memref<16x16xf32, #tpu.memory_space<vmem>>, vector<16x16xf32>
    %10 = vector.shape_cast %9 : vector<16x16xf32> to vector<1x16x16xf32>
    %11 = vector.broadcast %10 : vector<1x16x16xf32> to vector<2x16x16xf32>
    %12 = arith.addf %8, %11 : vector<2x16x16xf32>
    %13 = arith.negf %12 : vector<2x16x16xf32>
    %14 = math.exp %13 : vector<2x16x16xf32>
    %cst_7 = arith.constant 1.000000e+00 : f32
    %15 = vector.broadcast %cst_7 : f32 to vector<2x16x16xf32>
    %16 = arith.addf %15, %14 : vector<2x16x16xf32>
    %17 = arith.divf %15, %16 : vector<2x16x16xf32>
    %c0_8 = arith.constant 0 : index
    %c0_9 = arith.constant 0 : index
    %18 = vector.load %arg4[%c0_8, %c0_9] : memref<16x16xf32, #tpu.memory_space<vmem>>, vector<16x16xf32>
    %19 = vector.shape_cast %18 : vector<16x16xf32> to vector<1x16x16xf32>
    %20 = vector.broadcast %19 : vector<1x16x16xf32> to vector<2x16x16xf32>
    %cst_10 = arith.constant dense<0.000000e+00> : vector<2x16x16xf32>
    %21 = tpu.matmul %20, %17, %cst_10 {dimension_numbers = #tpu.dot_dimension_numbers<[2], [1], [1], [2], [0, 0, 0, 1, 1, 2], [0], [0]>} : vector<2x16x16xf32>, vector<2x16x16xf32>, vector<2x16x16xf32> -> vector<2x16x16xf32>
    %cst_11 = arith.constant dense<0xFF800000> : vector<2x16xf32>
    %22 = vector.multi_reduction <maximumf>, %21, %cst_11 [1] : vector<2x16x16xf32> to vector<2x16xf32>
    %23 = vector.shape_cast %22 : vector<2x16xf32> to vector<2x1x16xf32>
    %24 = vector.broadcast %23 : vector<2x1x16xf32> to vector<2x16x16xf32>
    %25 = arith.subf %21, %24 : vector<2x16x16xf32>
    %26 = math.exp %25 : vector<2x16x16xf32>
    %cst_12 = arith.constant dense<0.000000e+00> : vector<2x16xf32>
    %27 = vector.multi_reduction <add>, %26, %cst_12 [1] : vector<2x16x16xf32> to vector<2x16xf32>
    %28 = vector.shape_cast %27 : vector<2x16xf32> to vector<2x1x16xf32>
    %29 = tpu.reciprocal %28 {approx = true} : vector<2x1x16xf32> -> vector<2x1x16xf32>
    %30 = vector.broadcast %29 : vector<2x1x16xf32> to vector<2x16x16xf32>
    %31 = arith.mulf %26, %30 : vector<2x16x16xf32>
    %c0_13 = arith.constant 0 : index
    %c0_14 = arith.constant 0 : index
    %c0_15 = arith.constant 0 : index
    %32 = vector.load %arg5[%c0_13, %c0_14, %c0_15] : memref<2x16x16xf32, #tpu.memory_space<vmem>>, vector<2x16x16xf32>
    tpu.vector_store %arg5[%c0_13, %c0_14, %c0_15], %31 {strides = array<i32>} : memref<2x16x16xf32, #tpu.memory_space<vmem>>, vector<2x16x16xf32>,
    return
  }
  func.func @transform_0(%arg0: i32) -> (i32, i32, i32) {
    %c0_i32 = arith.constant 0 : i32
    %c0_i32_0 = arith.constant 0 : i32
    %c0_i32_1 = arith.constant 0 : i32
    return %arg0, %c0_i32, %c0_i32_0 : i32, i32, i32
  }
  func.func @transform_1(%arg0: i32) -> (i32, i32) {
    %c0_i32 = arith.constant 0 : i32
    %c0_i32_0 = arith.constant 0 : i32
    %c0_i32_1 = arith.constant 0 : i32
    return %c0_i32, %c0_i32_0 : i32, i32
  }
  func.func @transform_2(%arg0: i32) -> (i32, i32) {
    %c0_i32 = arith.constant 0 : i32
    %c0_i32_0 = arith.constant 0 : i32
    %c0_i32_1 = arith.constant 0 : i32
    return %c0_i32, %c0_i32_0 : i32, i32
  }
  func.func @transform_3(%arg0: i32) -> (i32, i32) {
    %c0_i32 = arith.constant 0 : i32
    %c0_i32_0 = arith.constant 0 : i32
    %c0_i32_1 = arith.constant 0 : i32
    return %c0_i32, %c0_i32_0 : i32, i32
  }
  func.func @transform_4(%arg0: i32) -> (i32, i32, i32) {
    %c0_i32 = arith.constant 0 : i32
    %c0_i32_0 = arith.constant 0 : i32
    %c0_i32_1 = arith.constant 0 : i32
    return %arg0, %c0_i32, %c0_i32_0 : i32, i32, i32
  }
}

</mosaic_0001>

<llo_original>
// kernel: spatial_attention.1
$region0: #{spatial_attention.1}
  #allocation0 [shape = 'u32[]', space=smem, size = 0x4, offset = 0x4, fixed_abs, tag = 'smem constant byte address 0x4 - core index']
  #allocation1 [shape = 'u32[144,128]{1,0:T(1,128)}', space=vmem, size = 0x12000, scoped, tag = 'internal scratch']
  %s0 = inlined_call_operand.vmem [shape: f32[2,16,32], index: 0, kind: input, shape index: {}]
  %s1 = inlined_call_operand.vmem [shape: f32[32,16], index: 1, kind: input, shape index: {}]
  %s2 = inlined_call_operand.vmem [shape: f32[16,16], index: 2, kind: input, shape index: {}]
  %s3 = inlined_call_operand.vmem [shape: f32[16,16], index: 3, kind: input, shape index: {}]
  %s4 = inlined_call_operand.hbm [shape: f32[2,16,16], index: 4, kind: output, shape index: {}]
  %s5 = sld [smem:[#allocation0]]
  $region26: #{spatial_attention.1} parent=0
    _
  %s7 = ssub.s32 1, %s5
  %s8 = scalar_select 0, %s7, %s5
  $region1: #{spatial_attention.1} parent=0
    #allocation2 [shape = 'u8[16384]{0}', space=vmem, size = 0x4000, scoped, tag = 'output window, operand 0, single buffered']
    #allocation3 [shape = 's32[1]{0}', space=sflag, size = 0x4, scoped, tag = 'scoped memory for spatial_attention.1']
    %9 = vsyncpa [#allocation3], 0
    // Predicated region
    $region2: #{spatial_attention.1} parent=1 // pred_check
      _
    $region3: #{spatial_attention.1} parent=1 // pred_check_branch
      %11 = sbr.rel (0) target = $region5
    $region4: #{spatial_attention.1} parent=1 // pred_region
      _
    $region5: #{spatial_attention.1} parent=1 // pred_fallthru
      _
    // Predicated region
    $region6: #{spatial_attention.1} parent=1 // pred_check
      _
    $region7: #{spatial_attention.1} parent=1 // pred_check_branch
      %13 = sbr.rel (0) target = $region9
    $region8: #{spatial_attention.1} parent=1 // pred_region
      _
    $region9: #{spatial_attention.1} parent=1 // pred_fallthru
      _
    // Predicated region
    $region10: #{spatial_attention.1} parent=1 // pred_check
      _
    $region11: #{spatial_attention.1} parent=1 // pred_check_branch
      %15 = sbr.rel (0) target = $region13
    $region12: #{spatial_attention.1} parent=1 // pred_region
      _
    $region13: #{spatial_attention.1} parent=1 // pred_fallthru
      _
    // Predicated region
    $region14: #{spatial_attention.1} parent=1 // pred_check
      _
    $region15: #{spatial_attention.1} parent=1 // pred_check_branch
      %17 = sbr.rel (0) target = $region17
    $region16: #{spatial_attention.1} parent=1 // pred_region
      _
    $region17: #{spatial_attention.1} parent=1 // pred_fallthru
      _
    %v18 = vld [vmem:[%s0] sm:$0xff]
    %v19 = vld [vmem:[%s0 + $0x8] sm:$0xff]
    %v20 = vld [vmem:[%s0 + $0x10] sm:$0xff]
    %v21 = vld [vmem:[%s0 + $0x18] sm:$0xff]
    %v22 = vld [vmem:[%s1] sm:$0xff]
    %v23 = vld [vmem:[%s1 + $0x8] sm:$0xff]
    %v24 = vld [vmem:[%s1 + $0x10] sm:$0xff]
    %v25 = vld [vmem:[%s1 + $0x18] sm:$0xff]
    %vm26 = vcmask 261120
    %v28 = vsel %vm26, %v18, 0
    %v31 = vsel %vm26, %v19, 0
    %v34 = vsel %vm26, %v20, 0
    %v37 = vsel %vm26, %v21, 0
    %39 = vmatprep.subr.mxu0 0.0
    %40 = vmatpush1.msra.mxu0 0.0
    %41 = vmatprep.subr.mxu0 0.0
    %42 = vmatpush1.msra.mxu0 0.0
    %43 = vmatprep.subr.mxu0 0.0
    %44 = vmatpush1.msra.mxu0 0.0
    %45 = vmatprep.subr.mxu0 0.0
    %46 = vmatpush1.msra.mxu0 0.0
    %47 = vmatprep.subr.mxu0 0.0
    %48 = vmatpush1.msra.mxu0 0.0
    %49 = vmatprep.subr.mxu0 0.0
    %50 = vmatpush1.msra.mxu0 0.0
    %51 = vmatprep.subr.mxu0 0.0
    %52 = vmatpush1.msra.mxu0 0.0
    %53 = vmatprep.subr.mxu0 0.0
    %54 = vmatpush1.msra.mxu0 0.0
    %55 = vmatprep.subr.mxu0 0.0
    %56 = vmatpush1.msra.mxu0 0.0
    %57 = vmatprep.subr.mxu0 0.0
    %58 = vmatpush1.msra.mxu0 0.0
    %59 = vmatprep.subr.mxu0 0.0
    %60 = vmatpush1.msra.mxu0 0.0
    %61 = vmatprep.subr.mxu0 0.0
    %62 = vmatpush1.msra.mxu0 0.0
    %63 = vmatprep.subr.mxu0 0.0
    %64 = vmatpush1.msra.mxu0 %v25
    %65 = vmatprep.subr.mxu0 0.0
    %66 = vmatpush1.msra.mxu0 %v24
    %67 = vmatprep.subr.mxu0 0.0
    %68 = vmatpush1.msra.mxu0 %v23
    %69 = vmatprep.subr.mxu0 0.0
    %70 = vmatpush1.msra.mxu0 %v22
    %71 = vmatprep.subr.mxu0 0.0
    %72 = vmatpush2.msra.mxu0 0.0
    %73 = vmatprep.subr.mxu0 0.0
    %74 = vmatpush2.msra.mxu0 0.0
    %75 = vmatprep.subr.mxu0 0.0
    %76 = vmatpush2.msra.mxu0 0.0
    %77 = vmatprep.subr.mxu0 0.0
    %78 = vmatpush2.msra.mxu0 0.0
    %79 = vmatprep.subr.mxu0 0.0
    %80 = vmatpush2.msra.mxu0 0.0
    %81 = vmatprep.subr.mxu0 0.0
    %82 = vmatpush2.msra.mxu0 0.0
    %83 = vmatprep.subr.mxu0 0.0
    %84 = vmatpush2.msra.mxu0 0.0
    %85 = vmatprep.subr.mxu0 0.0
    %86 = vmatpush2.msra.mxu0 0.0
    %87 = vmatprep.subr.mxu0 0.0
    %88 = vmatpush2.msra.mxu0 0.0
    %89 = vmatprep.subr.mxu0 0.0
    %90 = vmatpush2.msra.mxu0 0.0
    %91 = vmatprep.subr.mxu0 0.0
    %92 = vmatpush2.msra.mxu0 0.0
    %93 = vmatprep.subr.mxu0 0.0
    %94 = vmatpush2.msra.mxu0 0.0
    %95 = vmatprep.subr.mxu0 0.0
    %96 = vmatpush2.msra.mxu0 0.0
    %97 = vmatprep.subr.mxu0 0.0
    %98 = vmatpush2.msra.mxu0 0.0
    %99 = vmatprep.subr.mxu0 0.0
    %100 = vmatpush2.msra.mxu0 0.0
    %101 = vmatprep.subr.mxu0 0.0
    %102 = vmatpush2.msra.mxu0 0.0
    %103 = vmatprep.mubr.f32.mxu0 0.0
    %104 = vmatmul.mubr.f32.gmra.mxu0 %v28
    %v105 = vpop.f32.mrf.mxu0
    %v106 = vadd.f32 0.0, %v105
    %v107 = vpop.f32.mrf.mxu0
    %108 = vmatprep.mubr.f32.mxu0 0.0
    %109 = vmatmul.mubr.f32.gmra.mxu0 %v31
    %v110 = vpop.f32.mrf.mxu0
    %v111 = vadd.f32 0.0, %v110
    %v112 = vpop.f32.mrf.mxu0
    %113 = vmatprep.mubr.f32.mxu0 0.0
    %114 = vmatmul.mubr.f32.gmra.mxu0 %v34
    %v115 = vpop.f32.mrf.mxu0
    %v116 = vadd.f32 0.0, %v115
    %v117 = vpop.f32.mrf.mxu0
    %118 = vmatprep.mubr.f32.mxu0 0.0
    %119 = vmatmul.mubr.f32.gmra.mxu0 %v37
    %v120 = vpop.f32.mrf.mxu0
    %v121 = vadd.f32 0.0, %v120
    %v122 = vpop.f32.mrf.mxu0
    %123 = vdwg.mxu0
    %v124 = vld [vmem:[%s2] sm:$0xff]
    %v125 = vld [vmem:[%s2 + $0x8] sm:$0xff]
    %128 = vrot.lane.b32.xlu0 %v106, 120
    %v129 = vpop.permute.xlu0 %128
    %130 = vrot.lane.b32.xlu0 %v111, 120
    %v131 = vpop.permute.xlu0 %130
    %vm132 = vcmask 64512
    %v133 = vsel %vm132, %v106, 0
    %v135 = vsel %vm132, %v111, 0
    %v137 = vsel %vm132, %v129, 0
    %v139 = vsel %vm132, %v131, 0
    %141 = vmatprep.subr.mxu0 0.0
    %142 = vmatpush1.xpose.msra.mxu0 0.0
    %143 = vmatprep.subr.mxu0 0.0
    %144 = vmatpush1.xpose.msra.mxu0 0.0
    %145 = vmatprep.subr.mxu0 0.0
    %146 = vmatpush1.xpose.msra.mxu0 0.0
    %147 = vmatprep.subr.mxu0 0.0
    %148 = vmatpush1.xpose.msra.mxu0 0.0
    %149 = vmatprep.subr.mxu0 0.0
    %150 = vmatpush1.xpose.msra.mxu0 0.0
    %151 = vmatprep.subr.mxu0 0.0
    %152 = vmatpush1.xpose.msra.mxu0 0.0
    %153 = vmatprep.subr.mxu0 0.0
    %154 = vmatpush1.xpose.msra.mxu0 0.0
    %155 = vmatprep.subr.mxu0 0.0
    %156 = vmatpush1.xpose.msra.mxu0 0.0
    %157 = vmatprep.subr.mxu0 0.0
    %158 = vmatpush1.xpose.msra.mxu0 0.0
    %159 = vmatprep.subr.mxu0 0.0
    %160 = vmatpush1.xpose.msra.mxu0 0.0
    %161 = vmatprep.subr.mxu0 0.0
    %162 = vmatpush1.xpose.msra.mxu0 0.0
    %163 = vmatprep.subr.mxu0 0.0
    %164 = vmatpush1.xpose.msra.mxu0 0.0
    %165 = vmatprep.subr.mxu0 0.0
    %166 = vmatpush1.xpose.msra.mxu0 0.0
    %167 = vmatprep.subr.mxu0 0.0
    %168 = vmatpush1.xpose.msra.mxu0 0.0
    %169 = vmatprep.subr.mxu0 0.0
    %170 = vmatpush1.xpose.msra.mxu0 %v139
    %171 = vmatprep.subr.mxu0 0.0
    %172 = vmatpush1.xpose.msra.mxu0 %v137
    %173 = vmatprep.subr.mxu0 0.0
    %174 = vmatpush2.xpose.msra.mxu0 0.0
    %175 = vmatprep.subr.mxu0 0.0
    %176 = vmatpush2.xpose.msra.mxu0 0.0
    %177 = vmatprep.subr.mxu0 0.0
    %178 = vmatpush2.xpose.msra.mxu0 0.0
    %179 = vmatprep.subr.mxu0 0.0
    %180 = vmatpush2.xpose.msra.mxu0 0.0
    %181 = vmatprep.subr.mxu0 0.0
    %182 = vmatpush2.xpose.msra.mxu0 0.0
    %183 = vmatprep.subr.mxu0 0.0
    %184 = vmatpush2.xpose.msra.mxu0 0.0
    %185 = vmatprep.subr.mxu0 0.0
    %186 = vmatpush2.xpose.msra.mxu0 0.0
    %187 = vmatprep.subr.mxu0 0.0
    %188 = vmatpush2.xpose.msra.mxu0 0.0
    %189 = vmatprep.subr.mxu0 0.0
    %190 = vmatpush2.xpose.msra.mxu0 0.0
    %191 = vmatprep.subr.mxu0 0.0
    %192 = vmatpush2.xpose.msra.mxu0 0.0
    %193 = vmatprep.subr.mxu0 0.0
    %194 = vmatpush2.xpose.msra.mxu0 0.0
    %195 = vmatprep.subr.mxu0 0.0
    %196 = vmatpush2.xpose.msra.mxu0 0.0
    %197 = vmatprep.subr.mxu0 0.0
    %198 = vmatpush2.xpose.msra.mxu0 0.0
    %199 = vmatprep.subr.mxu0 0.0
    %200 = vmatpush2.xpose.msra.mxu0 0.0
    %201 = vmatprep.subr.mxu0 0.0
    %202 = vmatpush2.xpose.msra.mxu0 0.0
    %203 = vmatprep.subr.mxu0 0.0
    %204 = vmatpush2.xpose.msra.mxu0 0.0
    %205 = vmatprep.mubr.f32.mxu0 0.0
    %206 = vmatmul.mubr.f32.gmra.mxu0 %v133
    %v207 = vpop.f32.mrf.mxu0
    %v208 = vadd.f32 %v124, %v207
    %v209 = vpop.f32.mrf.mxu0
    %210 = vmatprep.mubr.f32.mxu0 0.0
    %211 = vmatmul.mubr.f32.gmra.mxu0 %v135
    %v212 = vpop.f32.mrf.mxu0
    %v213 = vadd.f32 %v125, %v212
    %v214 = vpop.f32.mrf.mxu0
    %215 = vdwg.mxu0
    %218 = vrot.lane.b32.xlu0 %v116, 120
    %v219 = vpop.permute.xlu0 %218
    %220 = vrot.lane.b32.xlu0 %v121, 120
    %v221 = vpop.permute.xlu0 %220
    %v222 = vsel %vm132, %v116, 0
    %v224 = vsel %vm132, %v121, 0
    %v226 = vsel %vm132, %v219, 0
    %v228 = vsel %vm132, %v221, 0
    %230 = vmatprep.subr.mxu0 0.0
    %231 = vmatpush1.xpose.msra.mxu0 0.0
    %232 = vmatprep.subr.mxu0 0.0
    %233 = vmatpush1.xpose.msra.mxu0 0.0
    %234 = vmatprep.subr.mxu0 0.0
    %235 = vmatpush1.xpose.msra.mxu0 0.0
    %236 = vmatprep.subr.mxu0 0.0
    %237 = vmatpush1.xpose.msra.mxu0 0.0
    %238 = vmatprep.subr.mxu0 0.0
    %239 = vmatpush1.xpose.msra.mxu0 0.0
    %240 = vmatprep.subr.mxu0 0.0
    %241 = vmatpush1.xpose.msra.mxu0 0.0
    %242 = vmatprep.subr.mxu0 0.0
    %243 = vmatpush1.xpose.msra.mxu0 0.0
    %244 = vmatprep.subr.mxu0 0.0
    %245 = vmatpush1.xpose.msra.mxu0 0.0
    %246 = vmatprep.subr.mxu0 0.0
    %247 = vmatpush1.xpose.msra.mxu0 0.0
    %248 = vmatprep.subr.mxu0 0.0
    %249 = vmatpush1.xpose.msra.mxu0 0.0
    %250 = vmatprep.subr.mxu0 0.0
    %251 = vmatpush1.xpose.msra.mxu0 0.0
    %252 = vmatprep.subr.mxu0 0.0
    %253 = vmatpush1.xpose.msra.mxu0 0.0
    %254 = vmatprep.subr.mxu0 0.0
    %255 = vmatpush1.xpose.msra.mxu0 0.0
    %256 = vmatprep.subr.mxu0 0.0
    %257 = vmatpush1.xpose.msra.mxu0 0.0
    %258 = vmatprep.subr.mxu0 0.0
    %259 = vmatpush1.xpose.msra.mxu0 %v228
    %260 = vmatprep.subr.mxu0 0.0
    %261 = vmatpush1.xpose.msra.mxu0 %v226
    %262 = vmatprep.subr.mxu0 0.0
    %263 = vmatpush2.xpose.msra.mxu0 0.0
    %264 = vmatprep.subr.mxu0 0.0
    %265 = vmatpush2.xpose.msra.mxu0 0.0
    %266 = vmatprep.subr.mxu0 0.0
    %267 = vmatpush2.xpose.msra.mxu0 0.0
    %268 = vmatprep.subr.mxu0 0.0
    %269 = vmatpush2.xpose.msra.mxu0 0.0
    %270 = vmatprep.subr.mxu0 0.0
    %271 = vmatpush2.xpose.msra.mxu0 0.0
    %272 = vmatprep.subr.mxu0 0.0
    %273 = vmatpush2.xpose.msra.mxu0 0.0
    %274 = vmatprep.subr.mxu0 0.0
    %275 = vmatpush2.xpose.msra.mxu0 0.0
    %276 = vmatprep.subr.mxu0 0.0
    %277 = vmatpush2.xpose.msra.mxu0 0.0
    %278 = vmatprep.subr.mxu0 0.0
    %279 = vmatpush2.xpose.msra.mxu0 0.0
    %280 = vmatprep.subr.mxu0 0.0
    %281 = vmatpush2.xpose.msra.mxu0 0.0
    %282 = vmatprep.subr.mxu0 0.0
    %283 = vmatpush2.xpose.msra.mxu0 0.0
    %284 = vmatprep.subr.mxu0 0.0
    %285 = vmatpush2.xpose.msra.mxu0 0.0
    %286 = vmatprep.subr.mxu0 0.0
    %287 = vmatpush2.xpose.msra.mxu0 0.0
    %288 = vmatprep.subr.mxu0 0.0
    %289 = vmatpush2.xpose.msra.mxu0 0.0
    %290 = vmatprep.subr.mxu0 0.0
    %291 = vmatpush2.xpose.msra.mxu0 0.0
    %292 = vmatprep.subr.mxu0 0.0
    %293 = vmatpush2.xpose.msra.mxu0 0.0
    %294 = vmatprep.mubr.f32.mxu0 0.0
    %295 = vmatmul.mubr.f32.gmra.mxu0 %v222
    %v296 = vpop.f32.mrf.mxu0
    %v297 = vadd.f32 %v124, %v296
    %v298 = vpop.f32.mrf.mxu0
    %299 = vmatprep.mubr.f32.mxu0 0.0
    %300 = vmatmul.mubr.f32.gmra.mxu0 %v224
    %v301 = vpop.f32.mrf.mxu0
    %v302 = vadd.f32 %v125, %v301
    %v303 = vpop.f32.mrf.mxu0
    %304 = vdwg.mxu0
    %v305 = vxor.u32 %v208, 2147483648
    %v306 = vxor.u32 %v213, 2147483648
    %v307 = vxor.u32 %v297, 2147483648
    %v308 = vxor.u32 %v302, 2147483648
    %v309 = vmul.f32 %v305, 1.442695
    %v310 = vpow.pop %v309
    %v311 = vmul.f32 %v306, 1.442695
    %v312 = vpow.pop %v311
    %v313 = vmul.f32 %v307, 1.442695
    %v314 = vpow.pop %v313
    %v315 = vmul.f32 %v308, 1.442695
    %v316 = vpow.pop %v315
    %v317 = vadd.f32 %v310, 1.0
    %v318 = vadd.f32 %v312, 1.0
    %v319 = vadd.f32 %v314, 1.0
    %v320 = vadd.f32 %v316, 1.0
    %v321 = vrcp.pop %v317
    %v322 = vmul.f32 1.0, %v321
    %v323 = vrcp.pop %v318
    %v324 = vmul.f32 1.0, %v323
    %v325 = vrcp.pop %v319
    %v326 = vmul.f32 1.0, %v325
    %v327 = vrcp.pop %v320
    %v328 = vmul.f32 1.0, %v327
    %v329 = vld [vmem:[%s3] sm:$0xff]
    %v330 = vld [vmem:[%s3 + $0x8] sm:$0xff]
    %vm331 = vcmask 130048
    %v333 = vsel %vm331, %v329, 0
    %v336 = vsel %vm331, %v330, 0
    %338 = vmatprep.subr.mxu0 0.0
    %339 = vmatpush1.msra.mxu0 0.0
    %340 = vmatprep.subr.mxu0 0.0
    %341 = vmatpush1.msra.mxu0 0.0
    %342 = vmatprep.subr.mxu0 0.0
    %343 = vmatpush1.msra.mxu0 0.0
    %344 = vmatprep.subr.mxu0 0.0
    %345 = vmatpush1.msra.mxu0 0.0
    %346 = vmatprep.subr.mxu0 0.0
    %347 = vmatpush1.msra.mxu0 0.0
    %348 = vmatprep.subr.mxu0 0.0
    %349 = vmatpush1.msra.mxu0 0.0
    %350 = vmatprep.subr.mxu0 0.0
    %351 = vmatpush1.msra.mxu0 0.0
    %352 = vmatprep.subr.mxu0 0.0
    %353 = vmatpush1.msra.mxu0 0.0
    %354 = vmatprep.subr.mxu0 0.0
    %355 = vmatpush1.msra.mxu0 0.0
    %356 = vmatprep.subr.mxu0 0.0
    %357 = vmatpush1.msra.mxu0 0.0
    %358 = vmatprep.subr.mxu0 0.0
    %359 = vmatpush1.msra.mxu0 0.0
    %360 = vmatprep.subr.mxu0 0.0
    %361 = vmatpush1.msra.mxu0 0.0
    %362 = vmatprep.subr.mxu0 0.0
    %363 = vmatpush1.msra.mxu0 0.0
    %364 = vmatprep.subr.mxu0 0.0
    %365 = vmatpush1.msra.mxu0 0.0
    %366 = vmatprep.subr.mxu0 0.0
    %367 = vmatpush1.msra.mxu0 %v324
    %368 = vmatprep.subr.mxu0 0.0
    %369 = vmatpush1.msra.mxu0 %v322
    %370 = vmatprep.subr.mxu0 0.0
    %371 = vmatpush2.msra.mxu0 0.0
    %372 = vmatprep.subr.mxu0 0.0
    %373 = vmatpush2.msra.mxu0 0.0
    %374 = vmatprep.subr.mxu0 0.0
    %375 = vmatpush2.msra.mxu0 0.0
    %376 = vmatprep.subr.mxu0 0.0
    %377 = vmatpush2.msra.mxu0 0.0
    %378 = vmatprep.subr.mxu0 0.0
    %379 = vmatpush2.msra.mxu0 0.0
    %380 = vmatprep.subr.mxu0 0.0
    %381 = vmatpush2.msra.mxu0 0.0
    %382 = vmatprep.subr.mxu0 0.0
    %383 = vmatpush2.msra.mxu0 0.0
    %384 = vmatprep.subr.mxu0 0.0
    %385 = vmatpush2.msra.mxu0 0.0
    %386 = vmatprep.subr.mxu0 0.0
    %387 = vmatpush2.msra.mxu0 0.0
    %388 = vmatprep.subr.mxu0 0.0
    %389 = vmatpush2.msra.mxu0 0.0
    %390 = vmatprep.subr.mxu0 0.0
    %391 = vmatpush2.msra.mxu0 0.0
    %392 = vmatprep.subr.mxu0 0.0
    %393 = vmatpush2.msra.mxu0 0.0
    %394 = vmatprep.subr.mxu0 0.0
    %395 = vmatpush2.msra.mxu0 0.0
    %396 = vmatprep.subr.mxu0 0.0
    %397 = vmatpush2.msra.mxu0 0.0
    %398 = vmatprep.subr.mxu0 0.0
    %399 = vmatpush2.msra.mxu0 0.0
    %400 = vmatprep.subr.mxu0 0.0
    %401 = vmatpush2.msra.mxu0 0.0
    %402 = vmatprep.mubr.f32.mxu0 0.0
    %403 = vmatmul.mubr.f32.gmra.mxu0 %v333
    %v404 = vpop.f32.mrf.mxu0
    %v405 = vadd.f32 0.0, %v404
    %v406 = vpop.f32.mrf.mxu0
    %407 = vmatprep.mubr.f32.mxu0 0.0
    %408 = vmatmul.mubr.f32.gmra.mxu0 %v336
    %v409 = vpop.f32.mrf.mxu0
    %v410 = vadd.f32 0.0, %v409
    %v411 = vpop.f32.mrf.mxu0
    %412 = vdwg.mxu0
    %413 = vmatprep.subr.mxu0 0.0
    %414 = vmatpush1.msra.mxu0 0.0
    %415 = vmatprep.subr.mxu0 0.0
    %416 = vmatpush1.msra.mxu0 0.0
    %417 = vmatprep.subr.mxu0 0.0
    %418 = vmatpush1.msra.mxu0 0.0
    %419 = vmatprep.subr.mxu0 0.0
    %420 = vmatpush1.msra.mxu0 0.0
    %421 = vmatprep.subr.mxu0 0.0
    %422 = vmatpush1.msra.mxu0 0.0
    %423 = vmatprep.subr.mxu0 0.0
    %424 = vmatpush1.msra.mxu0 0.0
    %425 = vmatprep.subr.mxu0 0.0
    %426 = vmatpush1.msra.mxu0 0.0
    %427 = vmatprep.subr.mxu0 0.0
    %428 = vmatpush1.msra.mxu0 0.0
    %429 = vmatprep.subr.mxu0 0.0
    %430 = vmatpush1.msra.mxu0 0.0
    %431 = vmatprep.subr.mxu0 0.0
    %432 = vmatpush1.msra.mxu0 0.0
    %433 = vmatprep.subr.mxu0 0.0
    %434 = vmatpush1.msra.mxu0 0.0
    %435 = vmatprep.subr.mxu0 0.0
    %436 = vmatpush1.msra.mxu0 0.0
    %437 = vmatprep.subr.mxu0 0.0
    %438 = vmatpush1.msra.mxu0 0.0
    %439 = vmatprep.subr.mxu0 0.0
    %440 = vmatpush1.msra.mxu0 0.0
    %441 = vmatprep.subr.mxu0 0.0
    %442 = vmatpush1.msra.mxu0 %v328
    %443 = vmatprep.subr.mxu0 0.0
    %444 = vmatpush1.msra.mxu0 %v326
    %445 = vmatprep.subr.mxu0 0.0
    %446 = vmatpush2.msra.mxu0 0.0
    %447 = vmatprep.subr.mxu0 0.0
    %448 = vmatpush2.msra.mxu0 0.0
    %449 = vmatprep.subr.mxu0 0.0
    %450 = vmatpush2.msra.mxu0 0.0
    %451 = vmatprep.subr.mxu0 0.0
    %452 = vmatpush2.msra.mxu0 0.0
    %453 = vmatprep.subr.mxu0 0.0
    %454 = vmatpush2.msra.mxu0 0.0
    %455 = vmatprep.subr.mxu0 0.0
    %456 = vmatpush2.msra.mxu0 0.0
    %457 = vmatprep.subr.mxu0 0.0
    %458 = vmatpush2.msra.mxu0 0.0
    %459 = vmatprep.subr.mxu0 0.0
    %460 = vmatpush2.msra.mxu0 0.0
    %461 = vmatprep.subr.mxu0 0.0
    %462 = vmatpush2.msra.mxu0 0.0
    %463 = vmatprep.subr.mxu0 0.0
    %464 = vmatpush2.msra.mxu0 0.0
    %465 = vmatprep.subr.mxu0 0.0
    %466 = vmatpush2.msra.mxu0 0.0
    %467 = vmatprep.subr.mxu0 0.0
    %468 = vmatpush2.msra.mxu0 0.0
    %469 = vmatprep.subr.mxu0 0.0
    %470 = vmatpush2.msra.mxu0 0.0
    %471 = vmatprep.subr.mxu0 0.0
    %472 = vmatpush2.msra.mxu0 0.0
    %473 = vmatprep.subr.mxu0 0.0
    %474 = vmatpush2.msra.mxu0 0.0
    %475 = vmatprep.subr.mxu0 0.0
    %476 = vmatpush2.msra.mxu0 0.0
    %477 = vmatprep.mubr.f32.mxu0 0.0
    %478 = vmatmul.mubr.f32.gmra.mxu0 %v333
    %v479 = vpop.f32.mrf.mxu0
    %v480 = vadd.f32 0.0, %v479
    %v481 = vpop.f32.mrf.mxu0
    %482 = vmatprep.mubr.f32.mxu0 0.0
    %483 = vmatmul.mubr.f32.gmra.mxu0 %v336
    %v484 = vpop.f32.mrf.mxu0
    %v485 = vadd.f32 0.0, %v484
    %v486 = vpop.f32.mrf.mxu0
    %487 = vdwg.mxu0
    %v488 = vsel %vm331, %v405, -inf
    %v489 = vsel %vm331, %v410, -inf
    %v490 = vmax.f32 %v488, %v489
    %v491 = vrot.slane %v490, 4
    %v492 = vmax.f32 %v490, %v491
    %v493 = vrot.slane %v492, 2
    %v494 = vmax.f32 %v492, %v493
    %v495 = vrot.slane %v494, 1
    %v496 = vmax.f32 %v494, %v495
    %v497 = vsel %vm331, %v480, -inf
    %v498 = vsel %vm331, %v485, -inf
    %v499 = vmax.f32 %v497, %v498
    %v500 = vrot.slane %v499, 4
    %v501 = vmax.f32 %v499, %v500
    %v502 = vrot.slane %v501, 2
    %v503 = vmax.f32 %v501, %v502
    %v504 = vrot.slane %v503, 1
    %v505 = vmax.f32 %v503, %v504
    %v506 = vsub.f32 %v405, %v496
    %v507 = vsub.f32 %v410, %v496
    %v508 = vsub.f32 %v480, %v505
    %v509 = vsub.f32 %v485, %v505
    %v510 = vmul.f32 %v506, 1.442695
    %v511 = vpow.pop %v510
    %v512 = vmul.f32 %v507, 1.442695
    %v513 = vpow.pop %v512
    %v514 = vmul.f32 %v508, 1.442695
    %v515 = vpow.pop %v514
    %v516 = vmul.f32 %v509, 1.442695
    %v517 = vpow.pop %v516
    %v518 = vsel %vm331, %v511, 0.0
    %v519 = vsel %vm331, %v513, 0.0
    %v520 = vadd.f32 %v518, %v519
    %v521 = vrot.slane %v520, 4
    %v522 = vadd.f32 %v520, %v521
    %v523 = vrot.slane %v522, 2
    %v524 = vadd.f32 %v522, %v523
    %v525 = vrot.slane %v524, 1
    %v526 = vadd.f32 %v524, %v525
    %v527 = vsel %vm331, %v515, 0.0
    %v528 = vsel %vm331, %v517, 0.0
    %v529 = vadd.f32 %v527, %v528
    %v530 = vrot.slane %v529, 4
    %v531 = vadd.f32 %v529, %v530
    %v532 = vrot.slane %v531, 2
    %v533 = vadd.f32 %v531, %v532
    %v534 = vrot.slane %v533, 1
    %v535 = vadd.f32 %v533, %v534
    %v536 = vrcp.pop %v526
    %v537 = vrcp.pop %v535
    %v538 = vmul.f32 %v511, %v536
    %v539 = vmul.f32 %v513, %v536
    %v540 = vmul.f32 %v515, %v537
    %v541 = vmul.f32 %v517, %v537
    %542 = vst.msk [vmem:[#allocation2] sm:$0xff] %vm331, %v538
    %543 = vst.msk [vmem:[#allocation2 + $0x8] sm:$0xff] %vm331, %v539
    %544 = vst.msk [vmem:[#allocation2 + $0x10] sm:$0xff] %vm331, %v540
    %545 = vst.msk [vmem:[#allocation2 + $0x18] sm:$0xff] %vm331, %v541
    // Predicated region
    $region18: #{spatial_attention.1} parent=1 // pred_check
      _
    $region19: #{spatial_attention.1} parent=1 // pred_check_branch
      %547 = sbr.rel (0) target = $region21
    $region20: #{spatial_attention.1} parent=1 // pred_region
      %s549 = ssub.s32 512, 512
      %550 = vsyncadd [#allocation3], %s549
      %s551 = sshll.u32 [#allocation2], 4
      %s552 = int_to_ptr.vmem [resolvable:$true] %s551
      %557 = dma.vmem_to_hbm [thread:$0]  %s552, 512, %s4, [#allocation3], 128, 128, 8
    $region21: #{spatial_attention.1} parent=1 // pred_fallthru
      _
    // Predicated region
    $region22: #{spatial_attention.1} parent=1 // pred_check
      _
    $region23: #{spatial_attention.1} parent=1 // pred_check_branch
      %559 = sbr.rel (0) target = $region25
    $region24: #{spatial_attention.1} parent=1 // pred_region
      %560 = dma.done [#allocation3], 512
    $region25: #{spatial_attention.1} parent=1 // pred_fallthru
      _
    %561 = vsyncpa [#allocation3], 1

</llo_original>
